<compile_context>
chip_gen: v7x
topology: tpu7x:2x2x1
jax: 0.10.0
libtpu: 0.0.40
codegen_flags: <defaults>
</compile_context>

<pallas_src>
import functools

import jax
import jax.numpy as jnp
from jax.experimental import pallas as pl
from jax.experimental.pallas import tpu as pltpu


# ----------------------------------------------------------------------------
# Fused kernel:  out = x @ W0^T + b0 + (scale * (x @ A^T)) @ B^T
# grid = (M tiles, Dout tiles, Din tiles)   -- Din (K) is the reduction axis
# ----------------------------------------------------------------------------
def _lora_kernel(scale_ref, x_ref, w0_ref, b0_ref, a_ref, bb_ref,
                 o_ref, xa_ref, sxa_ref):
    n = pl.program_id(1)
    k = pl.program_id(2)
    nk = pl.num_programs(2)

    x = x_ref[...].astype(w0_ref.dtype)         # no-op if already bf16

    # ---- base path: accumulate x @ W0^T directly into the f32 output block
    #      (it stays VMEM-resident across the whole k reduction) -------------
    @pl.when(k == 0)
    def _():
        o_ref[...] = jnp.broadcast_to(b0_ref[...], o_ref.shape)

    o_ref[...] += jnp.dot(x, w0_ref[...], preferred_element_type=jnp.float32)

    # ---- LoRA path: xa = x @ A^T depends only on (m, k); compute it on the
    #      first Dout tile only and reuse for every other Dout tile ----------
    @pl.when((n == 0) & (k == 0))
    def _():
        xa_ref[...] = jnp.zeros_like(xa_ref)

    @pl.when(n == 0)
    def _():
        xa_ref[...] += jnp.dot(x, a_ref[...], preferred_element_type=jnp.float32)

    # fold the per-row scale into the small rank-r intermediate ONCE per m tile
    @pl.when((n == 0) & (k == nk - 1))
    def _():
        sxa_ref[...] = (scale_ref[...] * xa_ref[...]).astype(sxa_ref.dtype)

    # ---- epilogue: add (scale * xa) @ B^T on the last k step ---------------
    @pl.when(k == nk - 1)
    def _():
        o_ref[...] += jnp.dot(sxa_ref[...], bb_ref[...],
                              preferred_element_type=jnp.float32)


# ----------------------------------------------------------------------------
# Tiling helpers
# ----------------------------------------------------------------------------
def _round_up(x, m):
    return ((x + m - 1) // m) * m


def _pick_tile(dim, preferred, align):
    """Largest align-multiple tile <= preferred that divides dim."""
    if dim <= preferred:
        return dim
    t = (preferred // align) * align
    while t >= align:
        if dim % t == 0:
            return t
        t -= align
    return dim  # no aligned divisor: full (untiled) dim — fine for weight dims


def _default_tiles():
    """Generation-aware tile defaults (VMEM sizes / rooflines differ)."""
    kind = ""
    try:
        kind = jax.devices()[0].device_kind.lower()
    except Exception:
        pass
    if "v6" in kind or "trillium" in kind:
        # ~13-14 MiB with double-buffering; intensity ~512 flops/byte
        return dict(tm=1024, tn=1024, tk=512)
    if "v7" in kind:
        # stay well inside v7x's 64 MiB physical VMEM; keep >=2 M tiles
        return dict(tm=1024, tn=512, tk=512)
    # v5e (and unknown): 512^3 is already compute-bound at ~6-7 MiB
    return dict(tm=512, tn=512, tk=512)


# ----------------------------------------------------------------------------
# One-time weight preparation (transpose + bf16 cast, outside jit)
# ----------------------------------------------------------------------------
def prepare_params(params, *, compute_dtype=jnp.bfloat16):
    return {
        "w0t": jnp.asarray(params["w0"].T, compute_dtype),     # (Din, Dout)
        "b0":  jnp.asarray(params["b0"].reshape(1, -1), jnp.float32),
        "at":  jnp.asarray(params["A"].T, compute_dtype),      # (Din, r)
        "bt":  jnp.asarray(params["B"].T, compute_dtype),      # (r, Dout)
        "w1t": jnp.asarray(params["w1"].T, jnp.float32),       # (1152, 12)
        "b1":  jnp.asarray(params["b1"], jnp.float32),
        "w2t": jnp.asarray(params["w2"].T, jnp.float32),       # (12, 1)
        "b2":  jnp.asarray(params["b2"], jnp.float32),
    }


# ----------------------------------------------------------------------------
# Forward wrapper
# ----------------------------------------------------------------------------
def lora_layer_forward(x, c, prep, *, alpha=1.0, tm=None, tn=None, tk=None):
    """x: (B, S, Din) f32;  c: (B, 1152) f32 or None;  prep: prepare_params()."""
    B, S, Din = x.shape
    Dout = prep["w0t"].shape[1]
    r = prep["at"].shape[1]
    M = B * S

    d = _default_tiles()
    tm = d["tm"] if tm is None else tm
    tn = d["tn"] if tn is None else tn
    tk = d["tk"] if tk is None else tk

    # ---- per-batch scale (tiny MLP; plain jnp — a pallas_call launch would
    #      cost more than its ~28 KFLOP of compute) --------------------------
    if c is not None:
        h = jax.nn.relu(c @ prep["w1t"] + prep["b1"])           # (B, 12)
        s = jax.nn.sigmoid(h @ prep["w2t"] + prep["b2"])        # (B, 1)
    else:
        s = jnp.full((B, 1), alpha / r, dtype=jnp.float32)
    scale_rows = jnp.broadcast_to(s[:, None, :], (B, S, 1)).reshape(M, 1)
    scale_rows = scale_rows.astype(jnp.float32)

    # ---- tile selection -----------------------------------------------------
    # TM: 16-aligned (bf16 sublane packing); pad M up to a tile multiple
    # rather than ever falling back to an untiled M axis.
    TM = min(tm, _round_up(M, 16))
    # keep at least 2 M tiles when possible so the "parallel" m axis can feed
    # both TensorCores (v7x megacore)
    while TM > 256 and _round_up(M, TM) // TM < 2:
        TM //= 2
    M_pad = _round_up(M, TM)

    TN = _pick_tile(Dout, tn, 128)
    TK = _pick_tile(Din, tk, 128)

    # ---- flatten (B, S) -> M rows; cast to bf16 only if reuse pays for it --
    x2d = x.reshape(M, Din)
    if Dout // TN > 3:
        x2d = x2d.astype(prep["w0t"].dtype)      # amortized over many N tiles
    if M_pad != M:
        x2d = jnp.pad(x2d, ((0, M_pad - M), (0, 0)))
        scale_rows = jnp.pad(scale_rows, ((0, M_pad - M), (0, 0)))

    grid = (M_pad // TM, Dout // TN, Din // TK)

    out2d = pl.pallas_call(
        _lora_kernel,
        out_shape=jax.ShapeDtypeStruct((M_pad, Dout), jnp.float32),
        grid_spec=pltpu.PrefetchScalarGridSpec(
            num_scalar_prefetch=0,
            grid=grid,
            in_specs=[
                pl.BlockSpec((TM, 1), lambda m, n, k: (m, 0)),     # scale rows
                pl.BlockSpec((TM, TK), lambda m, n, k: (m, k)),    # x
                pl.BlockSpec((TK, TN), lambda m, n, k: (k, n)),    # W0^T
                pl.BlockSpec((1, TN), lambda m, n, k: (0, n)),     # b0
                # A^T is only consumed at n == 0; clamp its block index for
                # n > 0 so it is not re-streamed for every Dout tile.
                pl.BlockSpec((TK, r),
                             lambda m, n, k: (jnp.where(n == 0, k, 0), 0)),
                pl.BlockSpec((r, TN), lambda m, n, k: (0, n)),     # B^T
            ],
            out_specs=pl.BlockSpec((TM, TN), lambda m, n, k: (m, n)),
            scratch_shapes=[
                pltpu.VMEM((TM, r), jnp.float32),          # xa accumulator
                pltpu.VMEM((TM, r), prep["w0t"].dtype),    # scale * xa (bf16)
            ],
        ),
        # n and k MUST stay "arbitrary": the xa/sxa scratch computed at n == 0
        # is reused by every later Dout tile of the same m tile (flipping n to
        # "parallel" would silently corrupt results).  m is the only parallel
        # axis and feeds both v7x cores.
        compiler_params=pltpu.CompilerParams(
            dimension_semantics=("parallel", "arbitrary", "arbitrary"),
        ),
    )(scale_rows, x2d, prep["w0t"], prep["b0"], prep["at"], prep["bt"])

    # TODO(synk): emit bf16 output here if the downstream consumer accepts it
    # (halves writeback + output-block VMEM); kept f32 to match the module.
    return out2d[:M].reshape(B, S, Dout).astype(x.dtype)


# ----------------------------------------------------------------------------
# Pure-JAX reference (mirrors the PyTorch module exactly, f32 throughout)
# ----------------------------------------------------------------------------
def lora_layer_reference(x, c, params, *, r=128, alpha=1.0):
    base = x @ params["w0"].T + params["b0"]
    lora = (x @ params["A"].T) @ params["B"].T
    if c is None:
        return base + (alpha / r) * lora
    h = jax.nn.relu(c @ params["w1"].T + params["b1"])
    s = jax.nn.sigmoid(h @ params["w2"].T + params["b2"])       # (B, 1)
    scale = s[:, 0][:, None, None]
    return base + scale * lora


# ----------------------------------------------------------------------------
# Deterministic parameter construction (PyTorch weight-shape conventions)
# ----------------------------------------------------------------------------
def make_params(key, in_features, out_features, r, cond_dim=1152):
    ks = jax.random.split(key, 7)
    return {
        # original_layer: nn.Linear(in_features, out_features)
        "w0": jax.random.normal(ks[0], (out_features, in_features), jnp.float32) * 0.02,
        "b0": jax.random.normal(ks[1], (out_features,), jnp.float32) * 0.02,
        # A: Linear(in, r, bias=False), B: Linear(r, out, bias=False); N(0, 0.01)
        "A": jax.random.normal(ks[2], (r, in_features), jnp.float32) * 0.01,
        "B": jax.random.normal(ks[3], (out_features, r), jnp.float32) * 0.01,
        # scale_mlp: Linear(1152, 12) -> ReLU -> Linear(12, 1) -> Sigmoid
        "w1": jax.random.normal(ks[4], (12, cond_dim), jnp.float32) * 0.02,
        "b1": jnp.zeros((12,), jnp.float32),
        "w2": jax.random.normal(ks[5], (1, 12), jnp.float32) * 0.02,
        "b2": jnp.zeros((1,), jnp.float32),
    }


if __name__ == "__main__":
    B, S = 2, 8
    Din, Dout = 256, 256
    R, ALPHA = 128, 1.0
    COND = 1152

    key = jax.random.PRNGKey(0)
    kx, kc, kp = jax.random.split(key, 3)
    x = jax.random.normal(kx, (B, S, Din), jnp.float32)
    c = jax.random.normal(kc, (B, COND), jnp.float32)
    params = make_params(kp, Din, Dout, R, COND)

    prep = prepare_params(params)               # transpose + bf16 cast, once
    fwd = jax.jit(functools.partial(lora_layer_forward, alpha=ALPHA))

    # conditioned path (c provided)
    out_c = jax.block_until_ready(fwd(x, c, prep))
    ref_c = lora_layer_reference(x, c, params, r=R, alpha=ALPHA)
    assert out_c.shape == ref_c.shape
    assert jnp.allclose(out_c, ref_c, atol=2e-2, rtol=2e-2), "conditioned path mismatch"

    # unconditioned path (c is None -> scale = alpha / r)
    out_n = jax.block_until_ready(fwd(x, None, prep))
    ref_n = lora_layer_reference(x, None, params, r=R, alpha=ALPHA)
    assert jnp.allclose(out_n, ref_n, atol=2e-2, rtol=2e-2), "unconditioned path mismatch"

    print("KERNEL_OK")
</pallas_src>

<mosaic_0001>
module attributes {stable_mosaic.version = 11 : i64} {
  func.func @_lora_kernel(%arg0: i32, %arg1: i32, %arg2: i32, %arg3: memref<16x1xf32, #tpu.memory_space<vmem>>, %arg4: memref<16x256xf32, #tpu.memory_space<vmem>>, %arg5: memref<256x256xbf16, #tpu.memory_space<vmem>>, %arg6: memref<1x256xf32, #tpu.memory_space<vmem>>, %arg7: memref<256x128xbf16, #tpu.memory_space<vmem>>, %arg8: memref<128x256xbf16, #tpu.memory_space<vmem>>, %arg9: memref<16x256xf32, #tpu.memory_space<vmem>>, %arg10: memref<16x128xf32, #tpu.memory_space<vmem>>, %arg11: memref<16x128xbf16, #tpu.memory_space<vmem>>) attributes {dimension_semantics = [#tpu.dimension_semantics<parallel>, #tpu.dimension_semantics<arbitrary>, #tpu.dimension_semantics<arbitrary>], iteration_bounds = array<i64: 1, 1, 1>, scalar_prefetch = 0 : i64, scratch_operands = 2 : i64, tpu.core_type = #tpu.core_type<tc>, window_params = [{transform_indices = @transform_0, window_bounds = array<i64: 16, 1>}, {transform_indices = @transform_1, window_bounds = array<i64: 16, 256>}, {transform_indices = @transform_2, window_bounds = array<i64: 256, 256>}, {transform_indices = @transform_3, window_bounds = array<i64: 1, 256>}, {transform_indices = @transform_4, window_bounds = array<i64: 256, 128>}, {transform_indices = @transform_5, window_bounds = array<i64: 128, 256>}, {transform_indices = @transform_6, window_bounds = array<i64: 16, 256>}]} {
    %c0 = arith.constant 0 : index
    %c0_0 = arith.constant 0 : index
    %0 = vector.load %arg4[%c0, %c0_0] : memref<16x256xf32, #tpu.memory_space<vmem>>, vector<16x256xf32>
    %1 = arith.truncf %0 : vector<16x256xf32> to vector<16x256xbf16>
    %c0_i32 = arith.constant 0 : i32
    %2 = arith.cmpi eq, %arg2, %c0_i32 : i32
    %3 = arith.extui %2 : i1 to i32
    %c0_i32_1 = arith.constant 0 : i32
    %4 = arith.cmpi ne, %3, %c0_i32_1 : i32
    scf.if %4 {
      %c0_18 = arith.constant 0 : index
      %c0_19 = arith.constant 0 : index
      %26 = vector.load %arg6[%c0_18, %c0_19] : memref<1x256xf32, #tpu.memory_space<vmem>>, vector<1x256xf32>
      %27 = vector.shape_cast %26 : vector<1x256xf32> to vector<1x256xf32>
      %28 = vector.broadcast %27 : vector<1x256xf32> to vector<16x256xf32>
      %c0_20 = arith.constant 0 : index
      %c0_21 = arith.constant 0 : index
      %29 = vector.load %arg9[%c0_20, %c0_21] : memref<16x256xf32, #tpu.memory_space<vmem>>, vector<16x256xf32>
      tpu.vector_store %arg9[%c0_20, %c0_21], %28 {strides = array<i32>} : memref<16x256xf32, #tpu.memory_space<vmem>>, vector<16x256xf32>,
    } else {
    }
    %c0_2 = arith.constant 0 : index
    %c0_3 = arith.constant 0 : index
    %5 = vector.load %arg9[%c0_2, %c0_3] : memref<16x256xf32, #tpu.memory_space<vmem>>, vector<16x256xf32>
    %c0_4 = arith.constant 0 : index
    %c0_5 = arith.constant 0 : index
    %6 = vector.load %arg5[%c0_4, %c0_5] : memref<256x256xbf16, #tpu.memory_space<vmem>>, vector<256x256xbf16>
    %cst = arith.constant dense<0.000000e+00> : vector<16x256xf32>
    %7 = tpu.matmul %1, %6, %cst {dimension_numbers = #tpu.dot_dimension_numbers<[1], [0], [0], [1], [0, 0, 1, 1], [], []>} : vector<16x256xbf16>, vector<256x256xbf16>, vector<16x256xf32> -> vector<16x256xf32>
    %8 = arith.addf %5, %7 : vector<16x256xf32>
    %c0_6 = arith.constant 0 : index
    %c0_7 = arith.constant 0 : index
    %9 = vector.load %arg9[%c0_6, %c0_7] : memref<16x256xf32, #tpu.memory_space<vmem>>, vector<16x256xf32>
    tpu.vector_store %arg9[%c0_6, %c0_7], %8 {strides = array<i32>} : memref<16x256xf32, #tpu.memory_space<vmem>>, vector<16x256xf32>,
    %c0_i32_8 = arith.constant 0 : i32
    %10 = arith.cmpi eq, %arg1, %c0_i32_8 : i32
    %c0_i32_9 = arith.constant 0 : i32
    %11 = arith.cmpi eq, %arg2, %c0_i32_9 : i32
    %12 = arith.andi %10, %11 : i1
    %13 = arith.extui %12 : i1 to i32
    %c0_i32_10 = arith.constant 0 : i32
    %14 = arith.cmpi ne, %13, %c0_i32_10 : i32
    scf.if %14 {
      %cst_18 = arith.constant 0.000000e+00 : f32
      %26 = vector.broadcast %cst_18 : f32 to vector<16x128xf32>
      %c0_19 = arith.constant 0 : index
      %c0_20 = arith.constant 0 : index
      %27 = vector.load %arg10[%c0_19, %c0_20] : memref<16x128xf32, #tpu.memory_space<vmem>>, vector<16x128xf32>
      tpu.vector_store %arg10[%c0_19, %c0_20], %26 {strides = array<i32>} : memref<16x128xf32, #tpu.memory_space<vmem>>, vector<16x128xf32>,
    } else {
    }
    %c0_i32_11 = arith.constant 0 : i32
    %15 = arith.cmpi eq, %arg1, %c0_i32_11 : i32
    %16 = arith.extui %15 : i1 to i32
    %c0_i32_12 = arith.constant 0 : i32
    %17 = arith.cmpi ne, %16, %c0_i32_12 : i32
    scf.if %17 {
      %c0_18 = arith.constant 0 : index
      %c0_19 = arith.constant 0 : index
      %26 = vector.load %arg10[%c0_18, %c0_19] : memref<16x128xf32, #tpu.memory_space<vmem>>, vector<16x128xf32>
      %c0_20 = arith.constant 0 : index
      %c0_21 = arith.constant 0 : index
      %27 = vector.load %arg7[%c0_20, %c0_21] : memref<256x128xbf16, #tpu.memory_space<vmem>>, vector<256x128xbf16>
      %cst_22 = arith.constant dense<0.000000e+00> : vector<16x128xf32>
      %28 = tpu.matmul %1, %27, %cst_22 {dimension_numbers = #tpu.dot_dimension_numbers<[1], [0], [0], [1], [0, 0, 1, 1], [], []>} : vector<16x256xbf16>, vector<256x128xbf16>, vector<16x128xf32> -> vector<16x128xf32>
      %29 = arith.addf %26, %28 : vector<16x128xf32>
      %c0_23 = arith.constant 0 : index
      %c0_24 = arith.constant 0 : index
      %30 = vector.load %arg10[%c0_23, %c0_24] : memref<16x128xf32, #tpu.memory_space<vmem>>, vector<16x128xf32>
      tpu.vector_store %arg10[%c0_23, %c0_24], %29 {strides = array<i32>} : memref<16x128xf32, #tpu.memory_space<vmem>>, vector<16x128xf32>,
    } else {
    }
    %c0_i32_13 = arith.constant 0 : i32
    %18 = arith.cmpi eq, %arg1, %c0_i32_13 : i32
    %c0_i32_14 = arith.constant 0 : i32
    %19 = arith.cmpi eq, %arg2, %c0_i32_14 : i32
    %20 = arith.andi %18, %19 : i1
    %21 = arith.extui %20 : i1 to i32
    %c0_i32_15 = arith.constant 0 : i32
    %22 = arith.cmpi ne, %21, %c0_i32_15 : i32
    scf.if %22 {
      %c0_18 = arith.constant 0 : index
      %c0_19 = arith.constant 0 : index
      %26 = vector.load %arg3[%c0_18, %c0_19] : memref<16x1xf32, #tpu.memory_space<vmem>>, vector<16x1xf32>
      %c0_20 = arith.constant 0 : index
      %c0_21 = arith.constant 0 : index
      %27 = vector.load %arg10[%c0_20, %c0_21] : memref<16x128xf32, #tpu.memory_space<vmem>>, vector<16x128xf32>
      %28 = vector.broadcast %26 : vector<16x1xf32> to vector<16x128xf32>
      %29 = arith.mulf %28, %27 : vector<16x128xf32>
      %30 = arith.truncf %29 : vector<16x128xf32> to vector<16x128xbf16>
      %c0_22 = arith.constant 0 : index
      %c0_23 = arith.constant 0 : index
      %31 = vector.load %arg11[%c0_22, %c0_23] : memref<16x128xbf16, #tpu.memory_space<vmem>>, vector<16x128xbf16>
      tpu.vector_store %arg11[%c0_22, %c0_23], %30 {strides = array<i32>} : memref<16x128xbf16, #tpu.memory_space<vmem>>, vector<16x128xbf16>,
    } else {
    }
    %c0_i32_16 = arith.constant 0 : i32
    %23 = arith.cmpi eq, %arg2, %c0_i32_16 : i32
    %24 = arith.extui %23 : i1 to i32
    %c0_i32_17 = arith.constant 0 : i32
    %25 = arith.cmpi ne, %24, %c0_i32_17 : i32
    scf.if %25 {
      %c0_18 = arith.constant 0 : index
      %c0_19 = arith.constant 0 : index
      %26 = vector.load %arg9[%c0_18, %c0_19] : memref<16x256xf32, #tpu.memory_space<vmem>>, vector<16x256xf32>
      %c0_20 = arith.constant 0 : index
      %c0_21 = arith.constant 0 : index
      %27 = vector.load %arg11[%c0_20, %c0_21] : memref<16x128xbf16, #tpu.memory_space<vmem>>, vector<16x128xbf16>
      %c0_22 = arith.constant 0 : index
      %c0_23 = arith.constant 0 : index
      %28 = vector.load %arg8[%c0_22, %c0_23] : memref<128x256xbf16, #tpu.memory_space<vmem>>, vector<128x256xbf16>
      %cst_24 = arith.constant dense<0.000000e+00> : vector<16x256xf32>
      %29 = tpu.matmul %27, %28, %cst_24 {dimension_numbers = #tpu.dot_dimension_numbers<[1], [0], [0], [1], [0, 0, 1, 1], [], []>} : vector<16x128xbf16>, vector<128x256xbf16>, vector<16x256xf32> -> vector<16x256xf32>
      %30 = arith.addf %26, %29 : vector<16x256xf32>
      %c0_25 = arith.constant 0 : index
      %c0_26 = arith.constant 0 : index
      %31 = vector.load %arg9[%c0_25, %c0_26] : memref<16x256xf32, #tpu.memory_space<vmem>>, vector<16x256xf32>
      tpu.vector_store %arg9[%c0_25, %c0_26], %30 {strides = array<i32>} : memref<16x256xf32, #tpu.memory_space<vmem>>, vector<16x256xf32>,
    } else {
    }
    return
  }
  func.func @transform_0(%arg0: i32, %arg1: i32, %arg2: i32) -> (i32, i32) {
    %c0_i32 = arith.constant 0 : i32
    %c0_i32_0 = arith.constant 0 : i32
    return %arg0, %c0_i32 : i32, i32
  }
  func.func @transform_1(%arg0: i32, %arg1: i32, %arg2: i32) -> (i32, i32) {
    %c0_i32 = arith.constant 0 : i32
    return %arg0, %arg2 : i32, i32
  }
  func.func @transform_2(%arg0: i32, %arg1: i32, %arg2: i32) -> (i32, i32) {
    %c0_i32 = arith.constant 0 : i32
    return %arg2, %arg1 : i32, i32
  }
  func.func @transform_3(%arg0: i32, %arg1: i32, %arg2: i32) -> (i32, i32) {
    %c0_i32 = arith.constant 0 : i32
    %c0_i32_0 = arith.constant 0 : i32
    return %c0_i32, %arg1 : i32, i32
  }
  func.func @transform_4(%arg0: i32, %arg1: i32, %arg2: i32) -> (i32, i32) {
    %c0_i32 = arith.constant 0 : i32
    %0 = arith.cmpi eq, %arg1, %c0_i32 : i32
    %c0_i32_0 = arith.constant 0 : i32
    %1 = arith.select %0, %arg2, %c0_i32_0 : i32
    %c0_i32_1 = arith.constant 0 : i32
    %c0_i32_2 = arith.constant 0 : i32
    return %1, %c0_i32_1 : i32, i32
  }
  func.func @transform_5(%arg0: i32, %arg1: i32, %arg2: i32) -> (i32, i32) {
    %c0_i32 = arith.constant 0 : i32
    %c0_i32_0 = arith.constant 0 : i32
    return %c0_i32, %arg1 : i32, i32
  }
  func.func @transform_6(%arg0: i32, %arg1: i32, %arg2: i32) -> (i32, i32) {
    %c0_i32 = arith.constant 0 : i32
    return %arg0, %arg1 : i32, i32
  }
}

</mosaic_0001>

<llo_original>
// kernel: lora_layer_forward.1
$region0: #{lora_layer_forward.1}
  #allocation0 [shape = 'u32[]', space=smem, size = 0x4, offset = 0x4, fixed_abs, tag = 'smem constant byte address 0x4 - core index']
  #allocation1 [shape = 'u32[144,128]{1,0:T(1,128)}', space=vmem, size = 0x12000, scoped, tag = 'internal scratch']
  #allocation2 [shape = 'f32[16,128]{1,0:T(8,128)}', space=vmem, size = 0x2000, scoped, tag = 'scratch operand']
  #allocation3 [shape = 'bf16[16,128]{1,0:T(16,128)(2,1)}', space=vmem, size = 0x1000, scoped, tag = 'scratch operand']
  %s0 = inlined_call_operand.vmem [shape: f32[16,1], index: 0, kind: input, shape index: {}]
  %s1 = inlined_call_operand.vmem [shape: f32[16,256], index: 1, kind: input, shape index: {}]
  %s2 = inlined_call_operand.hbm [shape: bf16[256,256], index: 2, kind: input, shape index: {}]
  %s3 = inlined_call_operand.vmem [shape: f32[1,256], index: 3, kind: input, shape index: {}]
  %s4 = inlined_call_operand.vmem [shape: bf16[256,128], index: 4, kind: input, shape index: {}]
  %s5 = inlined_call_operand.hbm [shape: bf16[128,256], index: 5, kind: input, shape index: {}]
  %s6 = inlined_call_operand.hbm [shape: f32[16,256], index: 6, kind: output, shape index: {}]
  %s7 = sld [smem:[#allocation0]]
  $region62: #{lora_layer_forward.1} parent=0
    _
  %s9 = ssub.s32 1, %s7
  %s10 = scalar_select 0, %s9, %s7
  $region1: #{lora_layer_forward.1} parent=0
    #allocation4 [shape = 'u8[131072]{0}', space=vmem, size = 0x20000, scoped, tag = 'input window, operand 2, single buffered']
    #allocation5 [shape = 's32[1]{0}', space=sflag, size = 0x4, scoped, tag = 'scoped memory for lora_layer_forward.1']
    #allocation6 [shape = 's32[1]{0}', space=sflag, size = 0x4, scoped, tag = 'scoped memory for lora_layer_forward.1']
    #allocation7 [shape = 'u8[65536]{0}', space=vmem, size = 0x10000, scoped, tag = 'input window, operand 5, single buffered']
    #allocation8 [shape = 's32[1]{0}', space=sflag, size = 0x4, scoped, tag = 'scoped memory for lora_layer_forward.1']
    #allocation9 [shape = 'u8[16384]{0}', space=vmem, size = 0x4000, scoped, tag = 'output window, operand 0, single buffered']
    %11 = vsyncpa [#allocation5], 0
    %12 = vsyncpa [#allocation8], 0
    %13 = vsyncpa [#allocation6], 0
    // Predicated region
    $region2: #{lora_layer_forward.1} parent=1 // pred_check
      _
    $region3: #{lora_layer_forward.1} parent=1 // pred_check_branch
      %15 = sbr.rel (0) target = $region5
    $region4: #{lora_layer_forward.1} parent=1 // pred_region
      _
    $region5: #{lora_layer_forward.1} parent=1 // pred_fallthru
      _
    // Predicated region
    $region6: #{lora_layer_forward.1} parent=1 // pred_check
      _
    $region7: #{lora_layer_forward.1} parent=1 // pred_check_branch
      %17 = sbr.rel (0) target = $region9
    $region8: #{lora_layer_forward.1} parent=1 // pred_region
      _
    $region9: #{lora_layer_forward.1} parent=1 // pred_fallthru
      _
    // Predicated region
    $region10: #{lora_layer_forward.1} parent=1 // pred_check
      _
    $region11: #{lora_layer_forward.1} parent=1 // pred_check_branch
      %19 = sbr.rel (0) target = $region13
    $region12: #{lora_layer_forward.1} parent=1 // pred_region
      %s21 = ssub.s32 4096, 4096
      %22 = vsyncadd [#allocation5], %s21
      %s23 = sshll.u32 [#allocation4], 4
      %s24 = int_to_ptr.vmem [resolvable:$true] %s23
      %29 = dma.hbm_to_vmem [thread:$0]  %s2, 4096, %s24, [#allocation5], 128, 128, 8
    $region13: #{lora_layer_forward.1} parent=1 // pred_fallthru
      _
    // Predicated region
    $region14: #{lora_layer_forward.1} parent=1 // pred_check
      _
    $region15: #{lora_layer_forward.1} parent=1 // pred_check_branch
      %31 = sbr.rel (0) target = $region17
    $region16: #{lora_layer_forward.1} parent=1 // pred_region
      _
    $region17: #{lora_layer_forward.1} parent=1 // pred_fallthru
      _
    // Predicated region
    $region18: #{lora_layer_forward.1} parent=1 // pred_check
      _
    $region19: #{lora_layer_forward.1} parent=1 // pred_check_branch
      %33 = sbr.rel (0) target = $region21
    $region20: #{lora_layer_forward.1} parent=1 // pred_region
      %p34 = scmp.eq.s32.totalorder 0, 0
      %s35 = scalar_select %p34, 0, 0
      %s36 = smul.u32 32, %s35
      %p37 = scmp.lt.s32.totalorder %s36, 31
      %s38 = scalar_select %p37, %s36, 31
      %s39 = smul.addr %s38, 4
      %s40 = scalar_lea.vmem %s4, %s39
      %p41 = scmp.eq.s32.totalorder 0, 0
      %s42 = scalar_select %p41, 0, 0
      %s43 = smul.u32 32, %s42
    $region21: #{lora_layer_forward.1} parent=1 // pred_fallthru
      _
    // Predicated region
    $region22: #{lora_layer_forward.1} parent=1 // pred_check
      _
    $region23: #{lora_layer_forward.1} parent=1 // pred_check_branch
      %45 = sbr.rel (0) target = $region25
    $region24: #{lora_layer_forward.1} parent=1 // pred_region
      %s47 = ssub.s32 2048, 2048
      %48 = vsyncadd [#allocation8], %s47
      %s49 = sshll.u32 [#allocation7], 4
      %s50 = int_to_ptr.vmem [resolvable:$true] %s49
      %55 = dma.hbm_to_vmem [thread:$0]  %s5, 2048, %s50, [#allocation8], 128, 128, 8
    $region25: #{lora_layer_forward.1} parent=1 // pred_fallthru
      _
    // Predicated region
    $region26: #{lora_layer_forward.1} parent=1 // pred_check
      _
    $region27: #{lora_layer_forward.1} parent=1 // pred_check_branch
      %57 = sbr.rel (0) target = $region29
    $region28: #{lora_layer_forward.1} parent=1 // pred_region
      %58 = dma.done [#allocation5], 4096
    $region29: #{lora_layer_forward.1} parent=1 // pred_fallthru
      _
    // Predicated region
    $region30: #{lora_layer_forward.1} parent=1 // pred_check
      _
    $region31: #{lora_layer_forward.1} parent=1 // pred_check_branch
      %60 = sbr.rel (0) target = $region33
    $region32: #{lora_layer_forward.1} parent=1 // pred_region
      %61 = dma.done [#allocation8], 2048
    $region33: #{lora_layer_forward.1} parent=1 // pred_fallthru
      _
    %p62 = scmp.eq.s32.totalorder 0, 0
    %s63 = scalar_select %p62, 0, 0
    %s64 = smul.u32 32, %s63
    %p65 = scmp.lt.s32.totalorder %s64, 31
    %s66 = scalar_select %p65, %s64, 31
    %s67 = smul.addr %s66, 4
    %s68 = scalar_lea.vmem %s4, %s67
    %p69 = scmp.eq.s32.totalorder 0, 0
    %s70 = scalar_select %p69, 0, 0
    %s71 = smul.u32 32, %s70
    %p72 = scmp.lt.s32.totalorder %s71, 31
    %s73 = scalar_select %p72, %s71, 31
    %s74 = smul.addr %s73, 4
    %s75 = scalar_lea.vmem %s4, %s74
    %p76 = scmp.eq.s32.totalorder 0, 0
    %s77 = scalar_select %p76, 0, 0
    %s78 = smul.u32 32, %s77
    %v80 = vld [vmem:[%s1] sm:$0xff]
    %v81 = vld [vmem:[%s1 + $0x8] sm:$0xff]
    %v82 = vld [vmem:[%s1 + $0x10] sm:$0xff]
    %v83 = vld [vmem:[%s1 + $0x18] sm:$0xff]
    %v84 = vpack.c.bf16 %v82, %v80
    %v85 = vpack.c.bf16 %v83, %v81
    %p86 = scmp.eq.s32.totalorder 0, 0
    // Predicated region
    $region34: #{lora_layer_forward.1} parent=1 // pred_check
      %p87 = pneg %p86
    $region35: #{lora_layer_forward.1} parent=1 // pred_check_branch
      %89 = sbr.rel (%p87) target = $region37
    $region36: #{lora_layer_forward.1} parent=1 // pred_region
      %v90 = vld [vmem:[%s3] sm:$0x3]
      %v92 = vlaneseq
      %v93 = vshrl.u32 %v92, 7
      %v94 = vsub.s32 0, %v93
      %v95 = vrot.slane %v90, %v94
      %v96 = vlaneseq
      %v97 = vshrl.u32 %v96, 7
      %v98 = vsub.s32 1, %v97
      %v99 = vrot.slane %v90, %v98
      %102 = vst [vmem:[#allocation9] sm:$0xff] %v95
      %103 = vst [vmem:[#allocation9 + $0x8] sm:$0xff] %v99
      %104 = vst [vmem:[#allocation9 + $0x10] sm:$0xff] %v95
      %105 = vst [vmem:[#allocation9 + $0x18] sm:$0xff] %v99
    $region37: #{lora_layer_forward.1} parent=1 // pred_fallthru
      _
    %v106 = vld [vmem:[#allocation9] sm:$0xff]
    %v107 = vld [vmem:[#allocation9 + $0x8] sm:$0xff]
    %v108 = vld [vmem:[#allocation9 + $0x10] sm:$0xff]
    %v109 = vld [vmem:[#allocation9 + $0x18] sm:$0xff]
    %v110 = vld [vmem:[#allocation4] sm:$0xff]
    %v111 = vld [vmem:[#allocation4 + $0x8] sm:$0xff]
    %v112 = vld [vmem:[#allocation4 + $0x10] sm:$0xff]
    %v113 = vld [vmem:[#allocation4 + $0x18] sm:$0xff]
    %v114 = vld [vmem:[#allocation4 + $0x20] sm:$0xff]
    %v115 = vld [vmem:[#allocation4 + $0x28] sm:$0xff]
    %v116 = vld [vmem:[#allocation4 + $0x30] sm:$0xff]
    %v117 = vld [vmem:[#allocation4 + $0x38] sm:$0xff]
    %v118 = vld [vmem:[#allocation4 + $0x40] sm:$0xff]
    %v119 = vld [vmem:[#allocation4 + $0x48] sm:$0xff]
    %v120 = vld [vmem:[#allocation4 + $0x50] sm:$0xff]
    %v121 = vld [vmem:[#allocation4 + $0x58] sm:$0xff]
    %v122 = vld [vmem:[#allocation4 + $0x60] sm:$0xff]
    %v123 = vld [vmem:[#allocation4 + $0x68] sm:$0xff]
    %v124 = vld [vmem:[#allocation4 + $0x70] sm:$0xff]
    %v125 = vld [vmem:[#allocation4 + $0x78] sm:$0xff]
    %v126 = vld [vmem:[#allocation4 + $0x80] sm:$0xff]
    %v127 = vld [vmem:[#allocation4 + $0x88] sm:$0xff]
    %v128 = vld [vmem:[#allocation4 + $0x90] sm:$0xff]
    %v129 = vld [vmem:[#allocation4 + $0x98] sm:$0xff]
    %v130 = vld [vmem:[#allocation4 + $0xa0] sm:$0xff]
    %v131 = vld [vmem:[#allocation4 + $0xa8] sm:$0xff]
    %v132 = vld [vmem:[#allocation4 + $0xb0] sm:$0xff]
    %v133 = vld [vmem:[#allocation4 + $0xb8] sm:$0xff]
    %v134 = vld [vmem:[#allocation4 + $0xc0] sm:$0xff]
    %v135 = vld [vmem:[#allocation4 + $0xc8] sm:$0xff]
    %v136 = vld [vmem:[#allocation4 + $0xd0] sm:$0xff]
    %v137 = vld [vmem:[#allocation4 + $0xd8] sm:$0xff]
    %v138 = vld [vmem:[#allocation4 + $0xe0] sm:$0xff]
    %v139 = vld [vmem:[#allocation4 + $0xe8] sm:$0xff]
    %v140 = vld [vmem:[#allocation4 + $0xf0] sm:$0xff]
    %v141 = vld [vmem:[#allocation4 + $0xf8] sm:$0xff]
    %v174 = vunpack.c.l.b16 %v110
    %v175 = vunpack.c.h.b16 %v110
    %v176 = vunpack.c.l.b16 %v111
    %v177 = vunpack.c.h.b16 %v111
    %v178 = vunpack.c.l.b16 %v112
    %v179 = vunpack.c.h.b16 %v112
    %v180 = vunpack.c.l.b16 %v113
    %v181 = vunpack.c.h.b16 %v113
    %v182 = vunpack.c.l.b16 %v114
    %v183 = vunpack.c.h.b16 %v114
    %v184 = vunpack.c.l.b16 %v115
    %v185 = vunpack.c.h.b16 %v115
    %v186 = vunpack.c.l.b16 %v116
    %v187 = vunpack.c.h.b16 %v116
    %v188 = vunpack.c.l.b16 %v117
    %v189 = vunpack.c.h.b16 %v117
    %v190 = vunpack.c.l.b16 %v118
    %v191 = vunpack.c.h.b16 %v118
    %v192 = vunpack.c.l.b16 %v119
    %v193 = vunpack.c.h.b16 %v119
    %v194 = vunpack.c.l.b16 %v120
    %v195 = vunpack.c.h.b16 %v120
    %v196 = vunpack.c.l.b16 %v121
    %v197 = vunpack.c.h.b16 %v121
    %v198 = vunpack.c.l.b16 %v122
    %v199 = vunpack.c.h.b16 %v122
    %v200 = vunpack.c.l.b16 %v123
    %v201 = vunpack.c.h.b16 %v123
    %v202 = vunpack.c.l.b16 %v124
    %v203 = vunpack.c.h.b16 %v124
    %v204 = vunpack.c.l.b16 %v125
    %v205 = vunpack.c.h.b16 %v125
    %v206 = vunpack.c.l.b16 %v126
    %v207 = vunpack.c.h.b16 %v126
    %v208 = vunpack.c.l.b16 %v127
    %v209 = vunpack.c.h.b16 %v127
    %v210 = vunpack.c.l.b16 %v128
    %v211 = vunpack.c.h.b16 %v128
    %v212 = vunpack.c.l.b16 %v129
    %v213 = vunpack.c.h.b16 %v129
    %v214 = vunpack.c.l.b16 %v130
    %v215 = vunpack.c.h.b16 %v130
    %v216 = vunpack.c.l.b16 %v131
    %v217 = vunpack.c.h.b16 %v131
    %v218 = vunpack.c.l.b16 %v132
    %v219 = vunpack.c.h.b16 %v132
    %v220 = vunpack.c.l.b16 %v133
    %v221 = vunpack.c.h.b16 %v133
    %v222 = vunpack.c.l.b16 %v134
    %v223 = vunpack.c.h.b16 %v134
    %v224 = vunpack.c.l.b16 %v135
    %v225 = vunpack.c.h.b16 %v135
    %v226 = vunpack.c.l.b16 %v136
    %v227 = vunpack.c.h.b16 %v136
    %v228 = vunpack.c.l.b16 %v137
    %v229 = vunpack.c.h.b16 %v137
    %v230 = vunpack.c.l.b16 %v138
    %v231 = vunpack.c.h.b16 %v138
    %v232 = vunpack.c.l.b16 %v139
    %v233 = vunpack.c.h.b16 %v139
    %v234 = vunpack.c.l.b16 %v140
    %v235 = vunpack.c.h.b16 %v140
    %v236 = vunpack.c.l.b16 %v141
    %v237 = vunpack.c.h.b16 %v141
    %v238 = vpack.c.b16 %v176, %v174
    %v239 = vpack.c.b16 %v177, %v175
    %v240 = vpack.c.b16 %v180, %v178
    %v241 = vpack.c.b16 %v181, %v179
    %v242 = vpack.c.b16 %v184, %v182
    %v243 = vpack.c.b16 %v185, %v183
    %v244 = vpack.c.b16 %v188, %v186
    %v245 = vpack.c.b16 %v189, %v187
    %v246 = vpack.c.b16 %v192, %v190
    %v247 = vpack.c.b16 %v193, %v191
    %v248 = vpack.c.b16 %v196, %v194
    %v249 = vpack.c.b16 %v197, %v195
    %v250 = vpack.c.b16 %v200, %v198
    %v251 = vpack.c.b16 %v201, %v199
    %v252 = vpack.c.b16 %v204, %v202
    %v253 = vpack.c.b16 %v205, %v203
    %v254 = vpack.c.b16 %v208, %v206
    %v255 = vpack.c.b16 %v209, %v207
    %v256 = vpack.c.b16 %v212, %v210
    %v257 = vpack.c.b16 %v213, %v211
    %v258 = vpack.c.b16 %v216, %v214
    %v259 = vpack.c.b16 %v217, %v215
    %v260 = vpack.c.b16 %v220, %v218
    %v261 = vpack.c.b16 %v221, %v219
    %v262 = vpack.c.b16 %v224, %v222
    %v263 = vpack.c.b16 %v225, %v223
    %v264 = vpack.c.b16 %v228, %v226
    %v265 = vpack.c.b16 %v229, %v227
    %v266 = vpack.c.b16 %v232, %v230
    %v267 = vpack.c.b16 %v233, %v231
    %v268 = vpack.c.b16 %v236, %v234
    %v269 = vpack.c.b16 %v237, %v235
    %302 = vmatprep.subr.bf16.mxu0 %v239
    %303 = vmatpush1.bf16.msra.mxu0 %v238
    %304 = vmatprep.subr.bf16.mxu0 %v241
    %305 = vmatpush1.bf16.msra.mxu0 %v240
    %306 = vmatprep.subr.bf16.mxu0 %v243
    %307 = vmatpush1.bf16.msra.mxu0 %v242
    %308 = vmatprep.subr.bf16.mxu0 %v245
    %309 = vmatpush1.bf16.msra.mxu0 %v244
    %310 = vmatprep.subr.bf16.mxu0 %v247
    %311 = vmatpush1.bf16.msra.mxu0 %v246
    %312 = vmatprep.subr.bf16.mxu0 %v249
    %313 = vmatpush1.bf16.msra.mxu0 %v248
    %314 = vmatprep.subr.bf16.mxu0 %v251
    %315 = vmatpush1.bf16.msra.mxu0 %v250
    %316 = vmatprep.subr.bf16.mxu0 %v253
    %317 = vmatpush1.bf16.msra.mxu0 %v252
    %318 = vmatprep.subr.bf16.mxu0 %v255
    %319 = vmatpush1.bf16.msra.mxu0 %v254
    %320 = vmatprep.subr.bf16.mxu0 %v257
    %321 = vmatpush1.bf16.msra.mxu0 %v256
    %322 = vmatprep.subr.bf16.mxu0 %v259
    %323 = vmatpush1.bf16.msra.mxu0 %v258
    %324 = vmatprep.subr.bf16.mxu0 %v261
    %325 = vmatpush1.bf16.msra.mxu0 %v260
    %326 = vmatprep.subr.bf16.mxu0 %v263
    %327 = vmatpush1.bf16.msra.mxu0 %v262
    %328 = vmatprep.subr.bf16.mxu0 %v265
    %329 = vmatpush1.bf16.msra.mxu0 %v264
    %330 = vmatprep.subr.bf16.mxu0 %v267
    %331 = vmatpush1.bf16.msra.mxu0 %v266
    %332 = vmatprep.subr.bf16.mxu0 %v269
    %333 = vmatpush1.bf16.msra.mxu0 %v268
    %334 = vmatprep.mubr.bf16.mxu0 %v85
    %335 = vmatmul.mubr.bf16.gmra.mrb[0].mxu0 %v84
    %v336 = vpop.f32.mrb[0].mxu0
    %v337 = vadd.f32 0.0, %v336
    %v338 = vpop.f32.mrb[0].mxu0
    %v339 = vadd.f32 0.0, %v338
    %v340 = vpop.f32.mrb[0].mxu0
    %v341 = vadd.f32 0.0, %v340
    %v342 = vpop.f32.mrb[0].mxu0
    %v343 = vadd.f32 0.0, %v342
    %344 = vdwg.mxu0
    %v345 = vadd.f32 %v106, %v337
    %v346 = vadd.f32 %v107, %v339
    %v347 = vadd.f32 %v108, %v341
    %v348 = vadd.f32 %v109, %v343
    %349 = vst [vmem:[#allocation9] sm:$0xff] %v345
    %350 = vst [vmem:[#allocation9 + $0x8] sm:$0xff] %v346
    %351 = vst [vmem:[#allocation9 + $0x10] sm:$0xff] %v347
    %352 = vst [vmem:[#allocation9 + $0x18] sm:$0xff] %v348
    %p353 = scmp.eq.s32.totalorder 0, 0
    %p354 = pnand %p353, %p86
    %p355 = pneg %p354
    // Predicated region
    $region38: #{lora_layer_forward.1} parent=1 // pred_check
      _
    $region39: #{lora_layer_forward.1} parent=1 // pred_check_branch
      %357 = sbr.rel (%p354) target = $region41
    $region40: #{lora_layer_forward.1} parent=1 // pred_region
      %358 = vst [vmem:[#allocation2] sm:$0xff] 0.0
      %359 = vst [vmem:[#allocation2 + $0x8] sm:$0xff] 0.0
    $region41: #{lora_layer_forward.1} parent=1 // pred_fallthru
      _
    // Predicated region
    $region42: #{lora_layer_forward.1} parent=1 // pred_check
      %p360 = pneg %p353
    $region43: #{lora_layer_forward.1} parent=1 // pred_check_branch
      %362 = sbr.rel (%p360) target = $region45
    $region44: #{lora_layer_forward.1} parent=1 // pred_region
      %v363 = vld [vmem:[#allocation2] sm:$0xff]
      %v364 = vld [vmem:[#allocation2 + $0x8] sm:$0xff]
      %v365 = vld [vmem:[%s75] sm:$0xf]
      %v366 = vld [vmem:[%s75 + $0x4] sm:$0xf]
      %v367 = vld [vmem:[%s75 + $0x8] sm:$0xf]
      %v368 = vld [vmem:[%s75 + $0xc] sm:$0xf]
      %v369 = vld [vmem:[%s75 + $0x10] sm:$0xf]
      %v370 = vld [vmem:[%s75 + $0x14] sm:$0xf]
      %v371 = vld [vmem:[%s75 + $0x18] sm:$0xf]
      %v372 = vld [vmem:[%s75 + $0x1c] sm:$0xf]
      %v373 = vld [vmem:[%s75 + $0x20] sm:$0xf]
      %v374 = vld [vmem:[%s75 + $0x24] sm:$0xf]
      %v375 = vld [vmem:[%s75 + $0x28] sm:$0xf]
      %v376 = vld [vmem:[%s75 + $0x2c] sm:$0xf]
      %v377 = vld [vmem:[%s75 + $0x30] sm:$0xf]
      %v378 = vld [vmem:[%s75 + $0x34] sm:$0xf]
      %v379 = vld [vmem:[%s75 + $0x38] sm:$0xf]
      %v380 = vld [vmem:[%s75 + $0x3c] sm:$0xf]
      %v381 = vld [vmem:[%s75 + $0x40] sm:$0xf]
      %v382 = vld [vmem:[%s75 + $0x44] sm:$0xf]
      %v383 = vld [vmem:[%s75 + $0x48] sm:$0xf]
      %v384 = vld [vmem:[%s75 + $0x4c] sm:$0xf]
      %v385 = vld [vmem:[%s75 + $0x50] sm:$0xf]
      %v386 = vld [vmem:[%s75 + $0x54] sm:$0xf]
      %v387 = vld [vmem:[%s75 + $0x58] sm:$0xf]
      %v388 = vld [vmem:[%s75 + $0x5c] sm:$0xf]
      %v389 = vld [vmem:[%s75 + $0x60] sm:$0xf]
      %v390 = vld [vmem:[%s75 + $0x64] sm:$0xf]
      %v391 = vld [vmem:[%s75 + $0x68] sm:$0xf]
      %v392 = vld [vmem:[%s75 + $0x6c] sm:$0xf]
      %v393 = vld [vmem:[%s75 + $0x70] sm:$0xf]
      %v394 = vld [vmem:[%s75 + $0x74] sm:$0xf]
      %v395 = vld [vmem:[%s75 + $0x78] sm:$0xf]
      %v396 = vld [vmem:[%s75 + $0x7c] sm:$0xf]
      %v429 = vunpack.c.l.b16 %v365
      %v430 = vunpack.c.l.b16 %v366
      %v431 = vunpack.c.l.b16 %v367
      %v432 = vunpack.c.l.b16 %v368
      %v433 = vunpack.c.l.b16 %v369
      %v434 = vunpack.c.l.b16 %v370
      %v435 = vunpack.c.l.b16 %v371
      %v436 = vunpack.c.l.b16 %v372
      %v437 = vunpack.c.l.b16 %v373
      %v438 = vunpack.c.l.b16 %v374
      %v439 = vunpack.c.l.b16 %v375
      %v440 = vunpack.c.l.b16 %v376
      %v441 = vunpack.c.l.b16 %v377
      %v442 = vunpack.c.l.b16 %v378
      %v443 = vunpack.c.l.b16 %v379
      %v444 = vunpack.c.l.b16 %v380
      %v445 = vunpack.c.l.b16 %v381
      %v446 = vunpack.c.l.b16 %v382
      %v447 = vunpack.c.l.b16 %v383
      %v448 = vunpack.c.l.b16 %v384
      %v449 = vunpack.c.l.b16 %v385
      %v450 = vunpack.c.l.b16 %v386
      %v451 = vunpack.c.l.b16 %v387
      %v452 = vunpack.c.l.b16 %v388
      %v453 = vunpack.c.l.b16 %v389
      %v454 = vunpack.c.l.b16 %v390
      %v455 = vunpack.c.l.b16 %v391
      %v456 = vunpack.c.l.b16 %v392
      %v457 = vunpack.c.l.b16 %v393
      %v458 = vunpack.c.l.b16 %v394
      %v459 = vunpack.c.l.b16 %v395
      %v460 = vunpack.c.l.b16 %v396
      %v461 = vpack.c.b16 %v430, %v429
      %v462 = vpack.c.b16 %v432, %v431
      %v463 = vpack.c.b16 %v434, %v433
      %v464 = vpack.c.b16 %v436, %v435
      %v465 = vpack.c.b16 %v438, %v437
      %v466 = vpack.c.b16 %v440, %v439
      %v467 = vpack.c.b16 %v442, %v441
      %v468 = vpack.c.b16 %v444, %v443
      %v469 = vpack.c.b16 %v446, %v445
      %v470 = vpack.c.b16 %v448, %v447
      %v471 = vpack.c.b16 %v450, %v449
      %v472 = vpack.c.b16 %v452, %v451
      %v473 = vpack.c.b16 %v454, %v453
      %v474 = vpack.c.b16 %v456, %v455
      %v475 = vpack.c.b16 %v458, %v457
      %v476 = vpack.c.b16 %v460, %v459
      %493 = vmatprep.subr.bf16.mxu0 0
      %494 = vmatpush1.bf16.msra.mxu0 %v461
      %495 = vmatprep.subr.bf16.mxu0 0
      %496 = vmatpush1.bf16.msra.mxu0 %v462
      %497 = vmatprep.subr.bf16.mxu0 0
      %498 = vmatpush1.bf16.msra.mxu0 %v463
      %499 = vmatprep.subr.bf16.mxu0 0
      %500 = vmatpush1.bf16.msra.mxu0 %v464
      %501 = vmatprep.subr.bf16.mxu0 0
      %502 = vmatpush1.bf16.msra.mxu0 %v465
      %503 = vmatprep.subr.bf16.mxu0 0
      %504 = vmatpush1.bf16.msra.mxu0 %v466
      %505 = vmatprep.subr.bf16.mxu0 0
      %506 = vmatpush1.bf16.msra.mxu0 %v467
      %507 = vmatprep.subr.bf16.mxu0 0
      %508 = vmatpush1.bf16.msra.mxu0 %v468
      %509 = vmatprep.subr.bf16.mxu0 0
      %510 = vmatpush1.bf16.msra.mxu0 %v469
      %511 = vmatprep.subr.bf16.mxu0 0
      %512 = vmatpush1.bf16.msra.mxu0 %v470
      %513 = vmatprep.subr.bf16.mxu0 0
      %514 = vmatpush1.bf16.msra.mxu0 %v471
      %515 = vmatprep.subr.bf16.mxu0 0
      %516 = vmatpush1.bf16.msra.mxu0 %v472
      %517 = vmatprep.subr.bf16.mxu0 0
      %518 = vmatpush1.bf16.msra.mxu0 %v473
      %519 = vmatprep.subr.bf16.mxu0 0
      %520 = vmatpush1.bf16.msra.mxu0 %v474
      %521 = vmatprep.subr.bf16.mxu0 0
      %522 = vmatpush1.bf16.msra.mxu0 %v475
      %523 = vmatprep.subr.bf16.mxu0 0
      %524 = vmatpush1.bf16.msra.mxu0 %v476
      %525 = vmatprep.mubr.bf16.mxu0 %v85
      %526 = vmatmul.mubr.bf16.gmra.mrb[0].mxu0 %v84
      %v527 = vpop.f32.mrb[0].mxu0
      %v528 = vadd.f32 0.0, %v527
      %v529 = vpop.f32.mrb[0].mxu0
      %v530 = vpop.f32.mrb[0].mxu0
      %v531 = vadd.f32 0.0, %v530
      %v532 = vpop.f32.mrb[0].mxu0
      %533 = vdwg.mxu0
      %v534 = vadd.f32 %v363, %v528
      %v535 = vadd.f32 %v364, %v531
      %536 = vst [vmem:[#allocation2] sm:$0xff] %v534
      %537 = vst [vmem:[#allocation2 + $0x8] sm:$0xff] %v535
    $region45: #{lora_layer_forward.1} parent=1 // pred_fallthru
      _
    // Predicated region
    $region46: #{lora_layer_forward.1} parent=1 // pred_check
      _
    $region47: #{lora_layer_forward.1} parent=1 // pred_check_branch
      %539 = sbr.rel (%p354) target = $region49
    $region48: #{lora_layer_forward.1} parent=1 // pred_region
      %v540 = vld [vmem:[%s0] sm:$0xff]
      %v541 = vld [vmem:[%s0 + $0x8] sm:$0xff]
      %v542 = vld [vmem:[#allocation2] sm:$0xff]
      %v543 = vld [vmem:[#allocation2 + $0x8] sm:$0xff]
      %545 = vset.pattern.permute.xlu0 0
      %546 = vperm.xlu0 %545, %v540
      %v547 = vpop.permute.xlu0 %546
      %550 = vset.pattern.permute.xlu0 0
      %551 = vperm.xlu0 %550, %v541
      %v552 = vpop.permute.xlu0 %551
      %v554 = vmul.f32 %v547, %v542
      %v555 = vmul.f32 %v552, %v543
      %v556 = vpack.c.bf16 %v555, %v554
      %557 = vst [vmem:[#allocation3] sm:$0xff] %v556
    $region49: #{lora_layer_forward.1} parent=1 // pred_fallthru
      _
    // Predicated region
    $region50: #{lora_layer_forward.1} parent=1 // pred_check
      %p558 = pneg %p86
    $region51: #{lora_layer_forward.1} parent=1 // pred_check_branch
      %560 = sbr.rel (%p558) target = $region53
    $region52: #{lora_layer_forward.1} parent=1 // pred_region
      %v561 = vld [vmem:[#allocation9] sm:$0xff]
      %v562 = vld [vmem:[#allocation9 + $0x8] sm:$0xff]
      %v563 = vld [vmem:[#allocation9 + $0x10] sm:$0xff]
      %v564 = vld [vmem:[#allocation9 + $0x18] sm:$0xff]
      %v565 = vld [vmem:[#allocation3] sm:$0xff]
      %v566 = vld [vmem:[#allocation7] sm:$0xff]
      %v567 = vld [vmem:[#allocation7 + $0x8] sm:$0xff]
      %v568 = vld [vmem:[#allocation7 + $0x10] sm:$0xff]
      %v569 = vld [vmem:[#allocation7 + $0x18] sm:$0xff]
      %v570 = vld [vmem:[#allocation7 + $0x20] sm:$0xff]
      %v571 = vld [vmem:[#allocation7 + $0x28] sm:$0xff]
      %v572 = vld [vmem:[#allocation7 + $0x30] sm:$0xff]
      %v573 = vld [vmem:[#allocation7 + $0x38] sm:$0xff]
      %v574 = vld [vmem:[#allocation7 + $0x40] sm:$0xff]
      %v575 = vld [vmem:[#allocation7 + $0x48] sm:$0xff]
      %v576 = vld [vmem:[#allocation7 + $0x50] sm:$0xff]
      %v577 = vld [vmem:[#allocation7 + $0x58] sm:$0xff]
      %v578 = vld [vmem:[#allocation7 + $0x60] sm:$0xff]
      %v579 = vld [vmem:[#allocation7 + $0x68] sm:$0xff]
      %v580 = vld [vmem:[#allocation7 + $0x70] sm:$0xff]
      %v581 = vld [vmem:[#allocation7 + $0x78] sm:$0xff]
      %v598 = vunpack.c.l.b16 %v566
      %v599 = vunpack.c.h.b16 %v566
      %v600 = vunpack.c.l.b16 %v567
      %v601 = vunpack.c.h.b16 %v567
      %v602 = vunpack.c.l.b16 %v568
      %v603 = vunpack.c.h.b16 %v568
      %v604 = vunpack.c.l.b16 %v569
      %v605 = vunpack.c.h.b16 %v569
      %v606 = vunpack.c.l.b16 %v570
      %v607 = vunpack.c.h.b16 %v570
      %v608 = vunpack.c.l.b16 %v571
      %v609 = vunpack.c.h.b16 %v571
      %v610 = vunpack.c.l.b16 %v572
      %v611 = vunpack.c.h.b16 %v572
      %v612 = vunpack.c.l.b16 %v573
      %v613 = vunpack.c.h.b16 %v573
      %v614 = vunpack.c.l.b16 %v574
      %v615 = vunpack.c.h.b16 %v574
      %v616 = vunpack.c.l.b16 %v575
      %v617 = vunpack.c.h.b16 %v575
      %v618 = vunpack.c.l.b16 %v576
      %v619 = vunpack.c.h.b16 %v576
      %v620 = vunpack.c.l.b16 %v577
      %v621 = vunpack.c.h.b16 %v577
      %v622 = vunpack.c.l.b16 %v578
      %v623 = vunpack.c.h.b16 %v578
      %v624 = vunpack.c.l.b16 %v579
      %v625 = vunpack.c.h.b16 %v579
      %v626 = vunpack.c.l.b16 %v580
      %v627 = vunpack.c.h.b16 %v580
      %v628 = vunpack.c.l.b16 %v581
      %v629 = vunpack.c.h.b16 %v581
      %v630 = vpack.c.b16 %v600, %v598
      %v631 = vpack.c.b16 %v601, %v599
      %v632 = vpack.c.b16 %v604, %v602
      %v633 = vpack.c.b16 %v605, %v603
      %v634 = vpack.c.b16 %v608, %v606
      %v635 = vpack.c.b16 %v609, %v607
      %v636 = vpack.c.b16 %v612, %v610
      %v637 = vpack.c.b16 %v613, %v611
      %v638 = vpack.c.b16 %v616, %v614
      %v639 = vpack.c.b16 %v617, %v615
      %v640 = vpack.c.b16 %v620, %v618
      %v641 = vpack.c.b16 %v621, %v619
      %v642 = vpack.c.b16 %v624, %v622
      %v643 = vpack.c.b16 %v625, %v623
      %v644 = vpack.c.b16 %v628, %v626
      %v645 = vpack.c.b16 %v629, %v627
      %662 = vmatprep.subr.bf16.mxu0 %v631
      %663 = vmatpush1.bf16.msra.mxu0 %v630
      %664 = vmatprep.subr.bf16.mxu0 %v633
      %665 = vmatpush1.bf16.msra.mxu0 %v632
      %666 = vmatprep.subr.bf16.mxu0 %v635
      %667 = vmatpush1.bf16.msra.mxu0 %v634
      %668 = vmatprep.subr.bf16.mxu0 %v637
      %669 = vmatpush1.bf16.msra.mxu0 %v636
      %670 = vmatprep.subr.bf16.mxu0 %v639
      %671 = vmatpush1.bf16.msra.mxu0 %v638
      %672 = vmatprep.subr.bf16.mxu0 %v641
      %673 = vmatpush1.bf16.msra.mxu0 %v640
      %674 = vmatprep.subr.bf16.mxu0 %v643
      %675 = vmatpush1.bf16.msra.mxu0 %v642
      %676 = vmatprep.subr.bf16.mxu0 %v645
      %677 = vmatpush1.bf16.msra.mxu0 %v644
      %678 = vmatprep.subr.bf16.mxu0 0
      %679 = vmatpush1.bf16.msra.mxu0 0
      %680 = vmatprep.subr.bf16.mxu0 0
      %681 = vmatpush1.bf16.msra.mxu0 0
      %682 = vmatprep.subr.bf16.mxu0 0
      %683 = vmatpush1.bf16.msra.mxu0 0
      %684 = vmatprep.subr.bf16.mxu0 0
      %685 = vmatpush1.bf16.msra.mxu0 0
      %686 = vmatprep.subr.bf16.mxu0 0
      %687 = vmatpush1.bf16.msra.mxu0 0
      %688 = vmatprep.subr.bf16.mxu0 0
      %689 = vmatpush1.bf16.msra.mxu0 0
      %690 = vmatprep.subr.bf16.mxu0 0
      %691 = vmatpush1.bf16.msra.mxu0 0
      %692 = vmatprep.subr.bf16.mxu0 0
      %693 = vmatpush1.bf16.msra.mxu0 0
      %694 = vmatprep.mubr.bf16.mxu0 0
      %695 = vmatmul.mubr.bf16.gmra.mrb[0].mxu0 %v565
      %v696 = vpop.f32.mrb[0].mxu0
      %v697 = vadd.f32 0.0, %v696
      %v698 = vpop.f32.mrb[0].mxu0
      %v699 = vadd.f32 0.0, %v698
      %v700 = vpop.f32.mrb[0].mxu0
      %v701 = vadd.f32 0.0, %v700
      %v702 = vpop.f32.mrb[0].mxu0
      %v703 = vadd.f32 0.0, %v702
      %704 = vdwg.mxu0
      %v705 = vadd.f32 %v561, %v697
      %v706 = vadd.f32 %v562, %v699
      %v707 = vadd.f32 %v563, %v701
      %v708 = vadd.f32 %v564, %v703
      %709 = vst [vmem:[#allocation9] sm:$0xff] %v705
      %710 = vst [vmem:[#allocation9 + $0x8] sm:$0xff] %v706
      %711 = vst [vmem:[#allocation9 + $0x10] sm:$0xff] %v707
      %712 = vst [vmem:[#allocation9 + $0x18] sm:$0xff] %v708
    $region53: #{lora_layer_forward.1} parent=1 // pred_fallthru
      _
    // Predicated region
    $region54: #{lora_layer_forward.1} parent=1 // pred_check
      _
    $region55: #{lora_layer_forward.1} parent=1 // pred_check_branch
      %714 = sbr.rel (0) target = $region57
    $region56: #{lora_layer_forward.1} parent=1 // pred_region
      %s716 = ssub.s32 512, 512
      %717 = vsyncadd [#allocation6], %s716
      %s718 = sshll.u32 [#allocation9], 4
      %s719 = int_to_ptr.vmem [resolvable:$true] %s718
      %724 = dma.vmem_to_hbm [thread:$0]  %s719, 512, %s6, [#allocation6], 256, 256, 16
    $region57: #{lora_layer_forward.1} parent=1 // pred_fallthru
      _
    // Predicated region
    $region58: #{lora_layer_forward.1} parent=1 // pred_check
      _
    $region59: #{lora_layer_forward.1} parent=1 // pred_check_branch
      %726 = sbr.rel (0) target = $region61
    $region60: #{lora_layer_forward.1} parent=1 // pred_region
      %727 = dma.done [#allocation6], 512
    $region61: #{lora_layer_forward.1} parent=1 // pred_fallthru
      _
    %728 = vsyncpa [#allocation5], 1
    %729 = vsyncpa [#allocation8], 1
    %730 = vsyncpa [#allocation6], 1

</llo_original>
